<compile_context>
chip_gen: v5e
topology: v5e:2x2
jax: 0.10.0
libtpu: 0.0.40
codegen_flags: <defaults>
</compile_context>

<pallas_src>
import jax
import jax.numpy as jnp
from jax.experimental import pallas as pl
from jax.experimental.pallas import tpu as pltpu

BN_EPS = 1e-5
H1, H2 = 256, 128            # hidden sizes fixed by the nn.Module
LATENT = 64                  # latent_size default
LATENT_PAD = 128             # lane-dense padded output width
WEIGHT_DTYPE = jnp.bfloat16  # native MXU path on v6e/v7x; halves weight DMA


def _bn_train(h, gamma, beta):
    """Training-mode BatchNorm1d (biased batch stats), centered variance."""
    inv_b = 1.0 / h.shape[0]                                  # static python float
    mean = jnp.sum(h, axis=0, keepdims=True) * inv_b
    c = h - mean
    var = jnp.sum(c * c, axis=0, keepdims=True) * inv_b
    scale = gamma * jax.lax.rsqrt(var + BN_EPS)               # EUP rsqrt
    return c * scale + beta


def encoder_kernel(x_ref, w_ref, p_ref, o_ref):
    obs = x_ref.shape[1]
    x = x_ref[...]                                  # (B, obs) f32
    p = p_ref[...]                                  # (8, 256) f32 BN/PReLU slab

    # Static views into the packed bf16 weight slab (no data movement).
    w2 = w_ref[0:H1, 0:H2]                          # (256, 128)
    w3 = w_ref[0:H2, H2:H2 + LATENT_PAD]            # (128, 128); cols >= 64 are 0
    w1 = w_ref[H1:H1 + obs, :]                      # (obs, 256)

    # ---- layer 1: fc1 (bias dead under batch-stat BN) -> BN -> PReLU ----
    h = jnp.dot(x.astype(WEIGHT_DTYPE), w1, preferred_element_type=jnp.float32)
    h = _bn_train(h, p[0:1, :], p[1:2, :])
    h = jnp.where(h >= 0.0, h, p[6:7, :] * h)       # PReLU a1 (lane-broadcast row)

    # ---- layer 2: fc2 -> BN -> PReLU ----
    h = jnp.dot(h.astype(WEIGHT_DTYPE), w2, preferred_element_type=jnp.float32)
    h = _bn_train(h, p[2:3, :H2], p[3:4, :H2])
    h = jnp.where(h >= 0.0, h, p[7:8, :H2] * h)     # PReLU a2

    # ---- layer 3: fc3 -> BN (padded cols stay exactly zero) ----
    h = jnp.dot(h.astype(WEIGHT_DTYPE), w3, preferred_element_type=jnp.float32)
    h = _bn_train(h, p[4:5, :LATENT_PAD], p[5:6, :LATENT_PAD])

    o_ref[...] = h.astype(o_ref.dtype)              # full-width (B,128) store


def pack_weights(w1, w2, w3):
    """Pack w1/w2/w3 (stored [in, out]) into one bf16 (256+obs, 256) slab."""
    obs = w1.shape[0]
    slab = jnp.zeros((H1 + obs, H1), WEIGHT_DTYPE)
    slab = slab.at[0:H1, 0:H2].set(w2.astype(WEIGHT_DTYPE))
    slab = slab.at[0:H2, H2:H2 + LATENT].set(w3.astype(WEIGHT_DTYPE))
    slab = slab.at[H1:H1 + obs, :].set(w1.astype(WEIGHT_DTYPE))
    return slab


def pack_bn_prelu(g1, be1, g2, be2, g3, be3, a1, a2):
    """Pack BN gamma/beta (rows 0-5) and PReLU slopes (rows 6-7, lane-broadcast)."""
    slab = jnp.zeros((8, H1), jnp.float32)
    slab = slab.at[0, :H1].set(g1.reshape(-1))
    slab = slab.at[1, :H1].set(be1.reshape(-1))
    slab = slab.at[2, :H2].set(g2.reshape(-1))
    slab = slab.at[3, :H2].set(be2.reshape(-1))
    slab = slab.at[4, :LATENT].set(g3.reshape(-1))
    slab = slab.at[5, :LATENT].set(be3.reshape(-1))
    slab = slab.at[6, :].set(a1)
    slab = slab.at[7, :].set(a2)
    return slab


def state_aggregation_encoder(state, w_slab, bn_slab):
    """state: [B, obs_dim] f32. Single kernel invocation, no grid."""
    B, obs = state.shape
    flops = 2 * B * (obs * H1 + H1 * H2 + H2 * LATENT_PAD)
    bytes_accessed = int(state.size * state.dtype.itemsize
                         + w_slab.size * w_slab.dtype.itemsize
                         + bn_slab.size * bn_slab.dtype.itemsize
                         + B * LATENT_PAD * 4)
    out = pl.pallas_call(
        encoder_kernel,
        out_shape=jax.ShapeDtypeStruct((B, LATENT_PAD), jnp.float32),
        in_specs=[
            pl.BlockSpec(memory_space=pltpu.MemorySpace.VMEM),   # state
            pl.BlockSpec(memory_space=pltpu.MemorySpace.VMEM),   # packed weights
            pl.BlockSpec(memory_space=pltpu.MemorySpace.VMEM),   # packed BN/PReLU
        ],
        out_specs=pl.BlockSpec(memory_space=pltpu.MemorySpace.VMEM),
        cost_estimate=pl.CostEstimate(flops=flops,
                                      transcendentals=H1 + H2 + LATENT_PAD,
                                      bytes_accessed=bytes_accessed),
    )(state, w_slab, bn_slab)
    return out[:, :LATENT]          # drop the lane-padding columns (exact zeros)


def init_params(key, obs_dim, latent_size=LATENT):
    """Synthetic parameters matching the nn.Module shapes (randomized BN affine
    so the correctness check exercises the full scale/shift path)."""
    ks = jax.random.split(key, 12)

    def lin(kw, kb, fan_in, fan_out):
        bound = 1.0 / jnp.sqrt(fan_in)
        w = jax.random.uniform(kw, (fan_in, fan_out), jnp.float32, -bound, bound)
        b = jax.random.uniform(kb, (1, fan_out), jnp.float32, -bound, bound)
        return w, b

    w1, b1 = lin(ks[0], ks[1], obs_dim, H1)
    w2, b2 = lin(ks[2], ks[3], H1, H2)
    w3, b3 = lin(ks[4], ks[5], H2, latent_size)

    def affine(kg, kb, n):
        g = jax.random.uniform(kg, (1, n), jnp.float32, 0.5, 1.5)
        be = 0.1 * jax.random.normal(kb, (1, n), jnp.float32)
        return g, be

    g1, be1 = affine(ks[6], ks[7], H1)
    g2, be2 = affine(ks[8], ks[9], H2)
    g3, be3 = affine(ks[10], ks[11], latent_size)

    return dict(
        w1=w1, b1=b1, g1=g1, be1=be1,
        w2=w2, b2=b2, g2=g2, be2=be2,
        w3=w3, b3=b3, g3=g3, be3=be3,
        a1=jnp.float32(0.25), a2=jnp.float32(0.25),   # PyTorch PReLU default
    )


def reference_forward(state, p):
    """Pure-JAX reference of the PyTorch forward (training-mode BatchNorm),
    with the matmul operands quantized to bf16 exactly as the kernel does.
    Keeps the linear biases (which the kernel legitimately drops under
    batch-stat BN)."""
    def q(v):
        return v.astype(WEIGHT_DTYPE).astype(jnp.float32)

    def block(x, w, b, g, be, a=None):
        h = q(x) @ q(w) + b
        mean = h.mean(axis=0, keepdims=True)
        var = ((h - mean) ** 2).mean(axis=0, keepdims=True)   # biased batch var
        h = (h - mean) / jnp.sqrt(var + BN_EPS) * g + be
        if a is not None:
            h = jnp.where(h >= 0.0, h, a * h)
        return h

    h = block(state, p["w1"], p["b1"], p["g1"], p["be1"], p["a1"])
    h = block(h, p["w2"], p["b2"], p["g2"], p["be2"], p["a2"])
    h = block(h, p["w3"], p["b3"], p["g3"], p["be3"])
    return h


if __name__ == "__main__":
    key = jax.random.PRNGKey(0)
    k_x, k_p = jax.random.split(key)

    B, OBS_DIM = 8, 16          # obs space shape prod = 16

    state = jax.random.normal(k_x, (B, OBS_DIM), dtype=jnp.float32)
    params = init_params(k_p, OBS_DIM, LATENT)

    w_slab = pack_weights(params["w1"], params["w2"], params["w3"])
    bn_slab = pack_bn_prelu(params["g1"], params["be1"],
                            params["g2"], params["be2"],
                            params["g3"], params["be3"],
                            params["a1"], params["a2"])

    encoder = jax.jit(state_aggregation_encoder)
    out = jax.block_until_ready(encoder(state, w_slab, bn_slab))

    ref = reference_forward(state, params)
    assert out.shape == (B, LATENT)
    # Tolerance 2e-3: kernel and reference requantize their (independently
    # computed, ~1e-6 apart) f32 intermediate activations to bf16, so rare
    # rounding-boundary flips can introduce ~1e-4-level differences.
    assert jnp.allclose(out, ref, atol=2e-3, rtol=2e-3), "mismatch vs reference"

    # TODO(synk): BatchNorm running_mean/running_var buffer updates (PyTorch
    # training-mode side effect) are not produced by this pure forward kernel.
    print("KERNEL_OK")
</pallas_src>

<mosaic_0001>
module attributes {stable_mosaic.version = 11 : i64} {
  func.func @encoder_kernel(%arg0: memref<8x16xf32, #tpu.memory_space<vmem>>, %arg1: memref<272x256xbf16, #tpu.memory_space<vmem>>, %arg2: memref<8x256xf32, #tpu.memory_space<vmem>>, %arg3: memref<8x128xf32, #tpu.memory_space<vmem>>) attributes {dimension_semantics = [], scalar_prefetch = 0 : i64, scratch_operands = 0 : i64, tpu.core_type = #tpu.core_type<tc>} {
    %c0 = arith.constant 0 : index
    %c0_0 = arith.constant 0 : index
    %0 = vector.load %arg0[%c0, %c0_0] : memref<8x16xf32, #tpu.memory_space<vmem>>, vector<8x16xf32>
    %c0_1 = arith.constant 0 : index
    %c0_2 = arith.constant 0 : index
    %1 = vector.load %arg2[%c0_1, %c0_2] : memref<8x256xf32, #tpu.memory_space<vmem>>, vector<8x256xf32>
    %c0_3 = arith.constant 0 : index
    %c0_4 = arith.constant 0 : index
    %2 = vector.load %arg1[%c0_3, %c0_4] : memref<272x256xbf16, #tpu.memory_space<vmem>>, vector<256x128xbf16>
    %c0_5 = arith.constant 0 : index
    %c128 = arith.constant 128 : index
    %3 = vector.load %arg1[%c0_5, %c128] : memref<272x256xbf16, #tpu.memory_space<vmem>>, vector<128x128xbf16>
    %c256 = arith.constant 256 : index
    %c0_6 = arith.constant 0 : index
    %4 = vector.load %arg1[%c256, %c0_6] : memref<272x256xbf16, #tpu.memory_space<vmem>>, vector<16x256xbf16>
    %5 = arith.truncf %0 : vector<8x16xf32> to vector<8x16xbf16>
    %cst = arith.constant dense<0.000000e+00> : vector<8x256xf32>
    %6 = tpu.matmul %5, %4, %cst {dimension_numbers = #tpu.dot_dimension_numbers<[1], [0], [0], [1], [0, 0, 1, 1], [], []>} : vector<8x16xbf16>, vector<16x256xbf16>, vector<8x256xf32> -> vector<8x256xf32>
    %7 = vector.extract_strided_slice %1 {offsets = [0, 0], sizes = [1, 256], strides = [1, 1]} : vector<8x256xf32> to vector<1x256xf32>
    %8 = vector.extract_strided_slice %1 {offsets = [1, 0], sizes = [1, 256], strides = [1, 1]} : vector<8x256xf32> to vector<1x256xf32>
    %cst_7 = arith.constant dense<0.000000e+00> : vector<256xf32>
    %9 = vector.multi_reduction <add>, %6, %cst_7 [0] : vector<8x256xf32> to vector<256xf32>
    %10 = vector.shape_cast %9 : vector<256xf32> to vector<1x256xf32>
    %cst_8 = arith.constant 1.250000e-01 : f32
    %11 = vector.broadcast %cst_8 : f32 to vector<1x256xf32>
    %12 = arith.mulf %10, %11 : vector<1x256xf32>
    %13 = vector.broadcast %12 : vector<1x256xf32> to vector<8x256xf32>
    %14 = arith.subf %6, %13 : vector<8x256xf32>
    %15 = arith.mulf %14, %14 : vector<8x256xf32>
    %cst_9 = arith.constant dense<0.000000e+00> : vector<256xf32>
    %16 = vector.multi_reduction <add>, %15, %cst_9 [0] : vector<8x256xf32> to vector<256xf32>
    %17 = vector.shape_cast %16 : vector<256xf32> to vector<1x256xf32>
    %cst_10 = arith.constant 1.250000e-01 : f32
    %18 = vector.broadcast %cst_10 : f32 to vector<1x256xf32>
    %19 = arith.mulf %17, %18 : vector<1x256xf32>
    %cst_11 = arith.constant 9.99999974E-6 : f32
    %20 = vector.broadcast %cst_11 : f32 to vector<1x256xf32>
    %21 = arith.addf %19, %20 : vector<1x256xf32>
    %22 = math.rsqrt %21 : vector<1x256xf32>
    %23 = arith.mulf %7, %22 : vector<1x256xf32>
    %24 = vector.broadcast %23 : vector<1x256xf32> to vector<8x256xf32>
    %25 = arith.mulf %14, %24 : vector<8x256xf32>
    %26 = vector.broadcast %8 : vector<1x256xf32> to vector<8x256xf32>
    %27 = arith.addf %25, %26 : vector<8x256xf32>
    %cst_12 = arith.constant 0.000000e+00 : f32
    %28 = vector.broadcast %cst_12 : f32 to vector<8x256xf32>
    %29 = arith.cmpf oge, %27, %28 : vector<8x256xf32>
    %30 = vector.extract_strided_slice %1 {offsets = [6, 0], sizes = [1, 256], strides = [1, 1]} : vector<8x256xf32> to vector<1x256xf32>
    %31 = vector.broadcast %30 : vector<1x256xf32> to vector<8x256xf32>
    %32 = arith.mulf %31, %27 : vector<8x256xf32>
    %33 = arith.select %29, %27, %32 : vector<8x256xi1>, vector<8x256xf32>
    %34 = arith.truncf %33 : vector<8x256xf32> to vector<8x256xbf16>
    %cst_13 = arith.constant dense<0.000000e+00> : vector<8x128xf32>
    %35 = tpu.matmul %34, %2, %cst_13 {dimension_numbers = #tpu.dot_dimension_numbers<[1], [0], [0], [1], [0, 0, 1, 1], [], []>} : vector<8x256xbf16>, vector<256x128xbf16>, vector<8x128xf32> -> vector<8x128xf32>
    %36 = vector.extract_strided_slice %1 {offsets = [2, 0], sizes = [1, 128], strides = [1, 1]} : vector<8x256xf32> to vector<1x128xf32>
    %37 = vector.extract_strided_slice %1 {offsets = [3, 0], sizes = [1, 128], strides = [1, 1]} : vector<8x256xf32> to vector<1x128xf32>
    %cst_14 = arith.constant dense<0.000000e+00> : vector<128xf32>
    %38 = vector.multi_reduction <add>, %35, %cst_14 [0] : vector<8x128xf32> to vector<128xf32>
    %39 = vector.shape_cast %38 : vector<128xf32> to vector<1x128xf32>
    %cst_15 = arith.constant 1.250000e-01 : f32
    %40 = vector.broadcast %cst_15 : f32 to vector<1x128xf32>
    %41 = arith.mulf %39, %40 : vector<1x128xf32>
    %42 = vector.broadcast %41 : vector<1x128xf32> to vector<8x128xf32>
    %43 = arith.subf %35, %42 : vector<8x128xf32>
    %44 = arith.mulf %43, %43 : vector<8x128xf32>
    %cst_16 = arith.constant dense<0.000000e+00> : vector<128xf32>
    %45 = vector.multi_reduction <add>, %44, %cst_16 [0] : vector<8x128xf32> to vector<128xf32>
    %46 = vector.shape_cast %45 : vector<128xf32> to vector<1x128xf32>
    %cst_17 = arith.constant 1.250000e-01 : f32
    %47 = vector.broadcast %cst_17 : f32 to vector<1x128xf32>
    %48 = arith.mulf %46, %47 : vector<1x128xf32>
    %cst_18 = arith.constant 9.99999974E-6 : f32
    %49 = vector.broadcast %cst_18 : f32 to vector<1x128xf32>
    %50 = arith.addf %48, %49 : vector<1x128xf32>
    %51 = math.rsqrt %50 : vector<1x128xf32>
    %52 = arith.mulf %36, %51 : vector<1x128xf32>
    %53 = vector.broadcast %52 : vector<1x128xf32> to vector<8x128xf32>
    %54 = arith.mulf %43, %53 : vector<8x128xf32>
    %55 = vector.broadcast %37 : vector<1x128xf32> to vector<8x128xf32>
    %56 = arith.addf %54, %55 : vector<8x128xf32>
    %cst_19 = arith.constant 0.000000e+00 : f32
    %57 = vector.broadcast %cst_19 : f32 to vector<8x128xf32>
    %58 = arith.cmpf oge, %56, %57 : vector<8x128xf32>
    %59 = vector.extract_strided_slice %1 {offsets = [7, 0], sizes = [1, 128], strides = [1, 1]} : vector<8x256xf32> to vector<1x128xf32>
    %60 = vector.broadcast %59 : vector<1x128xf32> to vector<8x128xf32>
    %61 = arith.mulf %60, %56 : vector<8x128xf32>
    %62 = arith.select %58, %56, %61 : vector<8x128xi1>, vector<8x128xf32>
    %63 = arith.truncf %62 : vector<8x128xf32> to vector<8x128xbf16>
    %cst_20 = arith.constant dense<0.000000e+00> : vector<8x128xf32>
    %64 = tpu.matmul %63, %3, %cst_20 {dimension_numbers = #tpu.dot_dimension_numbers<[1], [0], [0], [1], [0, 0, 1, 1], [], []>} : vector<8x128xbf16>, vector<128x128xbf16>, vector<8x128xf32> -> vector<8x128xf32>
    %65 = vector.extract_strided_slice %1 {offsets = [4, 0], sizes = [1, 128], strides = [1, 1]} : vector<8x256xf32> to vector<1x128xf32>
    %66 = vector.extract_strided_slice %1 {offsets = [5, 0], sizes = [1, 128], strides = [1, 1]} : vector<8x256xf32> to vector<1x128xf32>
    %cst_21 = arith.constant dense<0.000000e+00> : vector<128xf32>
    %67 = vector.multi_reduction <add>, %64, %cst_21 [0] : vector<8x128xf32> to vector<128xf32>
    %68 = vector.shape_cast %67 : vector<128xf32> to vector<1x128xf32>
    %cst_22 = arith.constant 1.250000e-01 : f32
    %69 = vector.broadcast %cst_22 : f32 to vector<1x128xf32>
    %70 = arith.mulf %68, %69 : vector<1x128xf32>
    %71 = vector.broadcast %70 : vector<1x128xf32> to vector<8x128xf32>
    %72 = arith.subf %64, %71 : vector<8x128xf32>
    %73 = arith.mulf %72, %72 : vector<8x128xf32>
    %cst_23 = arith.constant dense<0.000000e+00> : vector<128xf32>
    %74 = vector.multi_reduction <add>, %73, %cst_23 [0] : vector<8x128xf32> to vector<128xf32>
    %75 = vector.shape_cast %74 : vector<128xf32> to vector<1x128xf32>
    %cst_24 = arith.constant 1.250000e-01 : f32
    %76 = vector.broadcast %cst_24 : f32 to vector<1x128xf32>
    %77 = arith.mulf %75, %76 : vector<1x128xf32>
    %cst_25 = arith.constant 9.99999974E-6 : f32
    %78 = vector.broadcast %cst_25 : f32 to vector<1x128xf32>
    %79 = arith.addf %77, %78 : vector<1x128xf32>
    %80 = math.rsqrt %79 : vector<1x128xf32>
    %81 = arith.mulf %65, %80 : vector<1x128xf32>
    %82 = vector.broadcast %81 : vector<1x128xf32> to vector<8x128xf32>
    %83 = arith.mulf %72, %82 : vector<8x128xf32>
    %84 = vector.broadcast %66 : vector<1x128xf32> to vector<8x128xf32>
    %85 = arith.addf %83, %84 : vector<8x128xf32>
    %c0_26 = arith.constant 0 : index
    %c0_27 = arith.constant 0 : index
    %86 = vector.load %arg3[%c0_26, %c0_27] : memref<8x128xf32, #tpu.memory_space<vmem>>, vector<8x128xf32>
    tpu.vector_store %arg3[%c0_26, %c0_27], %85 {strides = array<i32>} : memref<8x128xf32, #tpu.memory_space<vmem>>, vector<8x128xf32>,
    return
  }
}

</mosaic_0001>

<llo_original>
// kernel: state_aggregation_encoder.1
$region0: #{state_aggregation_encoder.1}
  #allocation0 [shape = 'u32[]', space=smem, size = 0x4, offset = 0x4, fixed_abs, tag = 'smem constant byte address 0x4 - core index']
  #allocation1 [shape = 'u32[72,128]{1,0:T(1,128)}', space=vmem, size = 0x9000, scoped, tag = 'internal scratch']
  %s0 = inlined_call_operand.hbm [shape: f32[8,16], index: 0, kind: input, shape index: {}]
  %s1 = inlined_call_operand.hbm [shape: bf16[272,256], index: 1, kind: input, shape index: {}]
  %s2 = inlined_call_operand.hbm [shape: f32[8,256], index: 2, kind: input, shape index: {}]
  %s3 = inlined_call_operand.hbm [shape: f32[8,128], index: 3, kind: output, shape index: {}]
  %s4 = sld [smem:[#allocation0]]
  $region34: #{state_aggregation_encoder.1} parent=0
    _
  %s6 = ssub.s32 1, %s4
  %s7 = scalar_select 0, %s6, %s4
  $region1: #{state_aggregation_encoder.1} parent=0
    #allocation2 [shape = 'u8[4096]{0}', space=vmem, size = 0x1000, scoped, tag = 'input window, operand 0, single buffered']
    #allocation3 [shape = 's32[1]{0}', space=sflag, size = 0x4, scoped, tag = 'scoped memory for state_aggregation_encoder.1']
    #allocation4 [shape = 's32[1]{0}', space=sflag, size = 0x4, scoped, tag = 'scoped memory for state_aggregation_encoder.1']
    #allocation5 [shape = 'u8[139264]{0}', space=vmem, size = 0x22000, scoped, tag = 'input window, operand 1, single buffered']
    #allocation6 [shape = 's32[1]{0}', space=sflag, size = 0x4, scoped, tag = 'scoped memory for state_aggregation_encoder.1']
    #allocation7 [shape = 'u8[8192]{0}', space=vmem, size = 0x2000, scoped, tag = 'input window, operand 2, single buffered']
    #allocation8 [shape = 'u8[4096]{0}', space=vmem, size = 0x1000, scoped, tag = 'output window, operand 0, single buffered']
    %8 = vsyncpa [#allocation3], 0
    %9 = vsyncpa [#allocation6], 0
    %10 = vsyncpa [#allocation4], 0
    // Predicated region
    $region2: #{state_aggregation_encoder.1} parent=1 // pred_check
      _
    $region3: #{state_aggregation_encoder.1} parent=1 // pred_check_branch
      %12 = sbr.rel (0) target = $region5
    $region4: #{state_aggregation_encoder.1} parent=1 // pred_region
      %14 = vsyncadd [#allocation3], 0
      %s16 = sshll.u32 %s0, 4
      %s17 = int_to_ptr.hbm [resolvable:$true] %s16
      %s18 = sshll.u32 [#allocation2], 4
      %s19 = int_to_ptr.vmem [resolvable:$true] %s18
      %21 = dma.hbm_to_vmem [thread:$0]  %s17, 128, %s19, [#allocation3]
    $region5: #{state_aggregation_encoder.1} parent=1 // pred_fallthru
      _
    // Predicated region
    $region6: #{state_aggregation_encoder.1} parent=1 // pred_check
      _
    $region7: #{state_aggregation_encoder.1} parent=1 // pred_check_branch
      %23 = sbr.rel (0) target = $region9
    $region8: #{state_aggregation_encoder.1} parent=1 // pred_region
      %25 = vsyncadd [#allocation6], 0
      %s26 = sshll.u32 %s1, 4
      %s27 = int_to_ptr.hbm [resolvable:$true] %s26
      %s28 = sshll.u32 [#allocation5], 4
      %s29 = int_to_ptr.vmem [resolvable:$true] %s28
      %34 = dma.hbm_to_vmem [thread:$0]  %s27, 4352, %s29, [#allocation6], 128, 128, 8
    $region9: #{state_aggregation_encoder.1} parent=1 // pred_fallthru
      _
    // Predicated region
    $region10: #{state_aggregation_encoder.1} parent=1 // pred_check
      _
    $region11: #{state_aggregation_encoder.1} parent=1 // pred_check_branch
      %36 = sbr.rel (0) target = $region13
    $region12: #{state_aggregation_encoder.1} parent=1 // pred_region
      %38 = vsyncadd [#allocation6], 0
      %s40 = sshll.u32 %s2, 4
      %s41 = int_to_ptr.hbm [resolvable:$true] %s40
      %s42 = sshll.u32 [#allocation7], 4
      %s43 = int_to_ptr.vmem [resolvable:$true] %s42
      %45 = dma.hbm_to_vmem [thread:$0]  %s41, 256, %s43, [#allocation6]
    $region13: #{state_aggregation_encoder.1} parent=1 // pred_fallthru
      _
    // Predicated region
    $region14: #{state_aggregation_encoder.1} parent=1 // pred_check
      _
    $region15: #{state_aggregation_encoder.1} parent=1 // pred_check_branch
      %47 = sbr.rel (0) target = $region17
    $region16: #{state_aggregation_encoder.1} parent=1 // pred_region
      %49 = dma.done [#allocation3], 128
    $region17: #{state_aggregation_encoder.1} parent=1 // pred_fallthru
      _
    // Predicated region
    $region18: #{state_aggregation_encoder.1} parent=1 // pred_check
      _
    $region19: #{state_aggregation_encoder.1} parent=1 // pred_check_branch
      %51 = sbr.rel (0) target = $region21
    $region20: #{state_aggregation_encoder.1} parent=1 // pred_region
      %53 = dma.done [#allocation6], 4352
    $region21: #{state_aggregation_encoder.1} parent=1 // pred_fallthru
      _
    // Predicated region
    $region22: #{state_aggregation_encoder.1} parent=1 // pred_check
      _
    $region23: #{state_aggregation_encoder.1} parent=1 // pred_check_branch
      %55 = sbr.rel (0) target = $region25
    $region24: #{state_aggregation_encoder.1} parent=1 // pred_region
      %57 = dma.done [#allocation6], 256
    $region25: #{state_aggregation_encoder.1} parent=1 // pred_fallthru
      _
    %v59 = vld [vmem:[#allocation2] sm:$0xff]
    %v60 = vld [vmem:[#allocation7] sm:$0xff]
    %v61 = vld [vmem:[#allocation7 + $0x8] sm:$0xff]
    %v62 = vld [vmem:[#allocation5] sm:$0xf]
    %v63 = vld [vmem:[#allocation5 + $0x8] sm:$0xf]
    %v64 = vld [vmem:[#allocation5 + $0x10] sm:$0xf]
    %v65 = vld [vmem:[#allocation5 + $0x18] sm:$0xf]
    %v66 = vld [vmem:[#allocation5 + $0x20] sm:$0xf]
    %v67 = vld [vmem:[#allocation5 + $0x28] sm:$0xf]
    %v68 = vld [vmem:[#allocation5 + $0x30] sm:$0xf]
    %v69 = vld [vmem:[#allocation5 + $0x38] sm:$0xf]
    %v70 = vld [vmem:[#allocation5 + $0x40] sm:$0xf]
    %v71 = vld [vmem:[#allocation5 + $0x48] sm:$0xf]
    %v72 = vld [vmem:[#allocation5 + $0x50] sm:$0xf]
    %v73 = vld [vmem:[#allocation5 + $0x58] sm:$0xf]
    %v74 = vld [vmem:[#allocation5 + $0x60] sm:$0xf]
    %v75 = vld [vmem:[#allocation5 + $0x68] sm:$0xf]
    %v76 = vld [vmem:[#allocation5 + $0x70] sm:$0xf]
    %v77 = vld [vmem:[#allocation5 + $0x78] sm:$0xf]
    %v78 = vld [vmem:[#allocation5 + $0x80] sm:$0xf]
    %v79 = vld [vmem:[#allocation5 + $0x88] sm:$0xf]
    %v80 = vld [vmem:[#allocation5 + $0x90] sm:$0xf]
    %v81 = vld [vmem:[#allocation5 + $0x98] sm:$0xf]
    %v82 = vld [vmem:[#allocation5 + $0xa0] sm:$0xf]
    %v83 = vld [vmem:[#allocation5 + $0xa8] sm:$0xf]
    %v84 = vld [vmem:[#allocation5 + $0xb0] sm:$0xf]
    %v85 = vld [vmem:[#allocation5 + $0xb8] sm:$0xf]
    %v86 = vld [vmem:[#allocation5 + $0xc0] sm:$0xf]
    %v87 = vld [vmem:[#allocation5 + $0xc8] sm:$0xf]
    %v88 = vld [vmem:[#allocation5 + $0xd0] sm:$0xf]
    %v89 = vld [vmem:[#allocation5 + $0xd8] sm:$0xf]
    %v90 = vld [vmem:[#allocation5 + $0xe0] sm:$0xf]
    %v91 = vld [vmem:[#allocation5 + $0xe8] sm:$0xf]
    %v92 = vld [vmem:[#allocation5 + $0xf0] sm:$0xf]
    %v93 = vld [vmem:[#allocation5 + $0xf8] sm:$0xf]
    %v94 = vld [vmem:[#allocation5 + $0x4] sm:$0xf]
    %v95 = vld [vmem:[#allocation5 + $0xc] sm:$0xf]
    %v96 = vld [vmem:[#allocation5 + $0x14] sm:$0xf]
    %v97 = vld [vmem:[#allocation5 + $0x1c] sm:$0xf]
    %v98 = vld [vmem:[#allocation5 + $0x24] sm:$0xf]
    %v99 = vld [vmem:[#allocation5 + $0x2c] sm:$0xf]
    %v100 = vld [vmem:[#allocation5 + $0x34] sm:$0xf]
    %v101 = vld [vmem:[#allocation5 + $0x3c] sm:$0xf]
    %v102 = vld [vmem:[#allocation5 + $0x44] sm:$0xf]
    %v103 = vld [vmem:[#allocation5 + $0x4c] sm:$0xf]
    %v104 = vld [vmem:[#allocation5 + $0x54] sm:$0xf]
    %v105 = vld [vmem:[#allocation5 + $0x5c] sm:$0xf]
    %v106 = vld [vmem:[#allocation5 + $0x64] sm:$0xf]
    %v107 = vld [vmem:[#allocation5 + $0x6c] sm:$0xf]
    %v108 = vld [vmem:[#allocation5 + $0x74] sm:$0xf]
    %v109 = vld [vmem:[#allocation5 + $0x7c] sm:$0xf]
    %v110 = vld [vmem:[#allocation5 + $0x100] sm:$0xff]
    %v111 = vld [vmem:[#allocation5 + $0x108] sm:$0xff]
    %v112 = vpack.c.bf16 %v59, %v59
    %v115 = vunpack.c.l.b16 %v110
    %v116 = vunpack.c.h.b16 %v110
    %v117 = vunpack.c.l.b16 %v111
    %v118 = vunpack.c.h.b16 %v111
    %v119 = vpack.c.b16 %v117, %v115
    %v120 = vpack.c.b16 %v118, %v116
    %vm123 = vcmask 130048
    %v125 = vsel %vm123, %v112, 0
    %127 = vmatpush.bf16.msra.mxu0 0
    %128 = vmatpush.bf16.msra.mxu0 0
    %129 = vmatpush.bf16.msra.mxu0 0
    %130 = vmatpush.bf16.msra.mxu0 0
    %131 = vmatpush.bf16.msra.mxu0 0
    %132 = vmatpush.bf16.msra.mxu0 0
    %133 = vmatpush.bf16.msra.mxu0 0
    %134 = vmatpush.bf16.msra.mxu0 %v119
    %135 = vmatmul.bf16.gmra.mxu0 %v125
    %v136 = vpop.f32.mrf.mxu0
    %v137 = vadd.f32 0.0, %v136
    %v138 = vpop.f32.mrf.mxu0
    %139 = vdwg.mxu0
    %140 = vmatpush.bf16.msra.mxu0 0
    %141 = vmatpush.bf16.msra.mxu0 0
    %142 = vmatpush.bf16.msra.mxu0 0
    %143 = vmatpush.bf16.msra.mxu0 0
    %144 = vmatpush.bf16.msra.mxu0 0
    %145 = vmatpush.bf16.msra.mxu0 0
    %146 = vmatpush.bf16.msra.mxu0 0
    %147 = vmatpush.bf16.msra.mxu0 %v120
    %148 = vmatmul.bf16.gmra.mxu0 %v125
    %v149 = vpop.f32.mrf.mxu0
    %v150 = vadd.f32 0.0, %v149
    %v151 = vpop.f32.mrf.mxu0
    %152 = vdwg.mxu0
    %v153 = vrot.slane %v137, 4
    %v154 = vadd.f32 %v137, %v153
    %v155 = vrot.slane %v154, 2
    %v156 = vadd.f32 %v154, %v155
    %v157 = vrot.slane %v156, 1
    %v158 = vadd.f32 %v156, %v157
    %v159 = vrot.slane %v150, 4
    %v160 = vadd.f32 %v150, %v159
    %v161 = vrot.slane %v160, 2
    %v162 = vadd.f32 %v160, %v161
    %v163 = vrot.slane %v162, 1
    %v164 = vadd.f32 %v162, %v163
    %v165 = vmul.f32 %v158, 0.125
    %v166 = vmul.f32 %v164, 0.125
    %v167 = vsub.f32 %v137, %v165
    %v168 = vsub.f32 %v150, %v166
    %v169 = vmul.f32 %v167, %v167
    %v170 = vmul.f32 %v168, %v168
    %v171 = vrot.slane %v169, 4
    %v172 = vadd.f32 %v169, %v171
    %v173 = vrot.slane %v172, 2
    %v174 = vadd.f32 %v172, %v173
    %v175 = vrot.slane %v174, 1
    %v176 = vadd.f32 %v174, %v175
    %v177 = vrot.slane %v170, 4
    %v178 = vadd.f32 %v170, %v177
    %v179 = vrot.slane %v178, 2
    %v180 = vadd.f32 %v178, %v179
    %v181 = vrot.slane %v180, 1
    %v182 = vadd.f32 %v180, %v181
    %v183 = vmul.f32 %v176, 0.125
    %v184 = vmul.f32 %v182, 0.125
    %v185 = vadd.f32 %v183, 1e-05
    %v186 = vadd.f32 %v184, 1e-05
    %v187 = vrsqrt.pop %v185
    %v188 = vmul.f32 %v187, %v185
    %v189 = vmul.f32 %v188, %v187
    %v190 = vmul.f32 0.5, %v189
    %v191 = vsub.f32 1.5, %v190
    %v192 = vmul.f32 %v187, %v191
    %vm193 = vweird.f32 %v185
    %vm194 = vweird.f32 %v187
    %vm195 = vmor %vm193, %vm194
    %v196 = vsel %vm195, %v187, %v192
    %v197 = vrsqrt.pop %v186
    %v198 = vmul.f32 %v197, %v186
    %v199 = vmul.f32 %v198, %v197
    %v200 = vmul.f32 0.5, %v199
    %v201 = vsub.f32 1.5, %v200
    %v202 = vmul.f32 %v197, %v201
    %vm203 = vweird.f32 %v186
    %vm204 = vweird.f32 %v197
    %vm205 = vmor %vm203, %vm204
    %v206 = vsel %vm205, %v197, %v202
    %v207 = vmul.f32 %v60, %v196
    %v208 = vmul.f32 %v61, %v206
    %v209 = vperm.slane %v207, 0
    %v210 = vperm.slane %v208, 0
    %v211 = vmul.f32 %v167, %v209
    %v212 = vmul.f32 %v168, %v210
    %v213 = vperm.slane %v60, 1
    %v214 = vperm.slane %v61, 1
    %v215 = vadd.f32 %v211, %v213
    %v216 = vadd.f32 %v212, %v214
    %vm217 = vcmp.ge.f32.partialorder %v215, 0.0
    %vm218 = vcmp.ge.f32.partialorder %v216, 0.0
    %v219 = vperm.slane %v60, 6
    %v220 = vperm.slane %v61, 6
    %v221 = vmul.f32 %v219, %v215
    %v222 = vmul.f32 %v220, %v216
    %v223 = vsel %vm217, %v215, %v221
    %v224 = vsel %vm218, %v216, %v222
    %v225 = vpack.c.bf16 %v223, %v223
    %v226 = vpack.c.bf16 %v224, %v224
    %v259 = vunpack.c.l.b16 %v62
    %v260 = vunpack.c.l.b16 %v63
    %v261 = vunpack.c.l.b16 %v64
    %v262 = vunpack.c.l.b16 %v65
    %v263 = vunpack.c.l.b16 %v66
    %v264 = vunpack.c.l.b16 %v67
    %v265 = vunpack.c.l.b16 %v68
    %v266 = vunpack.c.l.b16 %v69
    %v267 = vunpack.c.l.b16 %v70
    %v268 = vunpack.c.l.b16 %v71
    %v269 = vunpack.c.l.b16 %v72
    %v270 = vunpack.c.l.b16 %v73
    %v271 = vunpack.c.l.b16 %v74
    %v272 = vunpack.c.l.b16 %v75
    %v273 = vunpack.c.l.b16 %v76
    %v274 = vunpack.c.l.b16 %v77
    %v275 = vunpack.c.l.b16 %v78
    %v276 = vunpack.c.l.b16 %v79
    %v277 = vunpack.c.l.b16 %v80
    %v278 = vunpack.c.l.b16 %v81
    %v279 = vunpack.c.l.b16 %v82
    %v280 = vunpack.c.l.b16 %v83
    %v281 = vunpack.c.l.b16 %v84
    %v282 = vunpack.c.l.b16 %v85
    %v283 = vunpack.c.l.b16 %v86
    %v284 = vunpack.c.l.b16 %v87
    %v285 = vunpack.c.l.b16 %v88
    %v286 = vunpack.c.l.b16 %v89
    %v287 = vunpack.c.l.b16 %v90
    %v288 = vunpack.c.l.b16 %v91
    %v289 = vunpack.c.l.b16 %v92
    %v290 = vunpack.c.l.b16 %v93
    %v291 = vpack.c.b16 %v260, %v259
    %v292 = vpack.c.b16 %v262, %v261
    %v293 = vpack.c.b16 %v264, %v263
    %v294 = vpack.c.b16 %v266, %v265
    %v295 = vpack.c.b16 %v268, %v267
    %v296 = vpack.c.b16 %v270, %v269
    %v297 = vpack.c.b16 %v272, %v271
    %v298 = vpack.c.b16 %v274, %v273
    %v299 = vpack.c.b16 %v276, %v275
    %v300 = vpack.c.b16 %v278, %v277
    %v301 = vpack.c.b16 %v280, %v279
    %v302 = vpack.c.b16 %v282, %v281
    %v303 = vpack.c.b16 %v284, %v283
    %v304 = vpack.c.b16 %v286, %v285
    %v305 = vpack.c.b16 %v288, %v287
    %v306 = vpack.c.b16 %v290, %v289
    %323 = vmatpush.bf16.msra.mxu0 %v298
    %324 = vmatpush.bf16.msra.mxu0 %v297
    %325 = vmatpush.bf16.msra.mxu0 %v296
    %326 = vmatpush.bf16.msra.mxu0 %v295
    %327 = vmatpush.bf16.msra.mxu0 %v294
    %328 = vmatpush.bf16.msra.mxu0 %v293
    %329 = vmatpush.bf16.msra.mxu0 %v292
    %330 = vmatpush.bf16.msra.mxu0 %v291
    %331 = vmatmul.bf16.gmra.mxu0 %v225
    %v332 = vpop.f32.mrf.mxu0
    %v333 = vadd.f32 0.0, %v332
    %v334 = vpop.f32.mrf.mxu0
    %335 = vdwg.mxu0
    %336 = vmatpush.bf16.msra.mxu0 %v306
    %337 = vmatpush.bf16.msra.mxu0 %v305
    %338 = vmatpush.bf16.msra.mxu0 %v304
    %339 = vmatpush.bf16.msra.mxu0 %v303
    %340 = vmatpush.bf16.msra.mxu0 %v302
    %341 = vmatpush.bf16.msra.mxu0 %v301
    %342 = vmatpush.bf16.msra.mxu0 %v300
    %343 = vmatpush.bf16.msra.mxu0 %v299
    %344 = vmatmul.bf16.gmra.mxu0 %v226
    %v345 = vpop.f32.mrf.mxu0
    %v346 = vadd.f32 %v333, %v345
    %v347 = vpop.f32.mrf.mxu0
    %348 = vdwg.mxu0
    %v349 = vrot.slane %v346, 4
    %v350 = vadd.f32 %v346, %v349
    %v351 = vrot.slane %v350, 2
    %v352 = vadd.f32 %v350, %v351
    %v353 = vrot.slane %v352, 1
    %v354 = vadd.f32 %v352, %v353
    %v355 = vmul.f32 %v354, 0.125
    %v356 = vsub.f32 %v346, %v355
    %v357 = vmul.f32 %v356, %v356
    %v358 = vrot.slane %v357, 4
    %v359 = vadd.f32 %v357, %v358
    %v360 = vrot.slane %v359, 2
    %v361 = vadd.f32 %v359, %v360
    %v362 = vrot.slane %v361, 1
    %v363 = vadd.f32 %v361, %v362
    %v364 = vmul.f32 %v363, 0.125
    %v365 = vadd.f32 %v364, 1e-05
    %v366 = vrsqrt.pop %v365
    %v367 = vmul.f32 %v366, %v365
    %v368 = vmul.f32 %v367, %v366
    %v369 = vmul.f32 0.5, %v368
    %v370 = vsub.f32 1.5, %v369
    %v371 = vmul.f32 %v366, %v370
    %vm372 = vweird.f32 %v365
    %vm373 = vweird.f32 %v366
    %vm374 = vmor %vm372, %vm373
    %v375 = vsel %vm374, %v366, %v371
    %v376 = vmul.f32 %v60, %v375
    %v377 = vperm.slane %v376, 2
    %v378 = vmul.f32 %v356, %v377
    %v379 = vperm.slane %v60, 3
    %v380 = vadd.f32 %v378, %v379
    %vm381 = vcmp.ge.f32.partialorder %v380, 0.0
    %v382 = vperm.slane %v60, 7
    %v383 = vmul.f32 %v382, %v380
    %v384 = vsel %vm381, %v380, %v383
    %v385 = vpack.c.bf16 %v384, %v384
    %v402 = vunpack.c.l.b16 %v94
    %v403 = vunpack.c.l.b16 %v95
    %v404 = vunpack.c.l.b16 %v96
    %v405 = vunpack.c.l.b16 %v97
    %v406 = vunpack.c.l.b16 %v98
    %v407 = vunpack.c.l.b16 %v99
    %v408 = vunpack.c.l.b16 %v100
    %v409 = vunpack.c.l.b16 %v101
    %v410 = vunpack.c.l.b16 %v102
    %v411 = vunpack.c.l.b16 %v103
    %v412 = vunpack.c.l.b16 %v104
    %v413 = vunpack.c.l.b16 %v105
    %v414 = vunpack.c.l.b16 %v106
    %v415 = vunpack.c.l.b16 %v107
    %v416 = vunpack.c.l.b16 %v108
    %v417 = vunpack.c.l.b16 %v109
    %v418 = vpack.c.b16 %v403, %v402
    %v419 = vpack.c.b16 %v405, %v404
    %v420 = vpack.c.b16 %v407, %v406
    %v421 = vpack.c.b16 %v409, %v408
    %v422 = vpack.c.b16 %v411, %v410
    %v423 = vpack.c.b16 %v413, %v412
    %v424 = vpack.c.b16 %v415, %v414
    %v425 = vpack.c.b16 %v417, %v416
    %434 = vmatpush.bf16.msra.mxu0 %v425
    %435 = vmatpush.bf16.msra.mxu0 %v424
    %436 = vmatpush.bf16.msra.mxu0 %v423
    %437 = vmatpush.bf16.msra.mxu0 %v422
    %438 = vmatpush.bf16.msra.mxu0 %v421
    %439 = vmatpush.bf16.msra.mxu0 %v420
    %440 = vmatpush.bf16.msra.mxu0 %v419
    %441 = vmatpush.bf16.msra.mxu0 %v418
    %442 = vmatmul.bf16.gmra.mxu0 %v385
    %v443 = vpop.f32.mrf.mxu0
    %v444 = vadd.f32 0.0, %v443
    %v445 = vpop.f32.mrf.mxu0
    %446 = vdwg.mxu0
    %v447 = vrot.slane %v444, 4
    %v448 = vadd.f32 %v444, %v447
    %v449 = vrot.slane %v448, 2
    %v450 = vadd.f32 %v448, %v449
    %v451 = vrot.slane %v450, 1
    %v452 = vadd.f32 %v450, %v451
    %v453 = vmul.f32 %v452, 0.125
    %v454 = vsub.f32 %v444, %v453
    %v455 = vmul.f32 %v454, %v454
    %v456 = vrot.slane %v455, 4
    %v457 = vadd.f32 %v455, %v456
    %v458 = vrot.slane %v457, 2
    %v459 = vadd.f32 %v457, %v458
    %v460 = vrot.slane %v459, 1
    %v461 = vadd.f32 %v459, %v460
    %v462 = vmul.f32 %v461, 0.125
    %v463 = vadd.f32 %v462, 1e-05
    %v464 = vrsqrt.pop %v463
    %v465 = vmul.f32 %v464, %v463
    %v466 = vmul.f32 %v465, %v464
    %v467 = vmul.f32 0.5, %v466
    %v468 = vsub.f32 1.5, %v467
    %v469 = vmul.f32 %v464, %v468
    %vm470 = vweird.f32 %v463
    %vm471 = vweird.f32 %v464
    %vm472 = vmor %vm470, %vm471
    %v473 = vsel %vm472, %v464, %v469
    %v474 = vmul.f32 %v60, %v473
    %v475 = vperm.slane %v474, 4
    %v476 = vmul.f32 %v454, %v475
    %v477 = vperm.slane %v60, 5
    %v478 = vadd.f32 %v476, %v477
    %479 = vst [vmem:[#allocation8] sm:$0xff] %v478
    // Predicated region
    $region26: #{state_aggregation_encoder.1} parent=1 // pred_check
      _
    $region27: #{state_aggregation_encoder.1} parent=1 // pred_check_branch
      %481 = sbr.rel (0) target = $region29
    $region28: #{state_aggregation_encoder.1} parent=1 // pred_region
      %483 = vsyncadd [#allocation4], 0
      %s485 = sshll.u32 [#allocation8], 4
      %s486 = int_to_ptr.vmem [resolvable:$true] %s485
      %s487 = sshll.u32 %s3, 4
      %s488 = int_to_ptr.hbm [resolvable:$true] %s487
      %490 = dma.vmem_to_hbm [thread:$0]  %s486, 128, %s488, [#allocation4]
    $region29: #{state_aggregation_encoder.1} parent=1 // pred_fallthru
      _
    // Predicated region
    $region30: #{state_aggregation_encoder.1} parent=1 // pred_check
      _
    $region31: #{state_aggregation_encoder.1} parent=1 // pred_check_branch
      %492 = sbr.rel (0) target = $region33
    $region32: #{state_aggregation_encoder.1} parent=1 // pred_region
      %494 = dma.done [#allocation4], 128
    $region33: #{state_aggregation_encoder.1} parent=1 // pred_fallthru
      _
    %495 = vsyncpa [#allocation3], 1
    %496 = vsyncpa [#allocation6], 1
    %497 = vsyncpa [#allocation4], 1

</llo_original>
